<compile_context>
chip_gen: v7x
topology: tpu7x:2x2x1
jax: 0.10.0
libtpu: 0.0.40
codegen_flags: <defaults>
</compile_context>

<pallas_src>
import jax
import jax.numpy as jnp
from jax import lax
from jax.experimental import pallas as pl
from jax.experimental.pallas import tpu as pltpu

VOCAB_SIZE = 50
EMBED_DIM = 32
NUM_FILTERS = 16
FILTER_SIZES = (2, 3, 4)
NUM_CLASSES = 4
S_MAX = max(FILTER_SIZES)                  # 4 conv taps (largest filter size)
NF = NUM_FILTERS * len(FILTER_SIZES)       # 48 merged conv channels
VPAD = 64                                  # per-tap vocab padding (50 -> 64)
KPAD = S_MAX * VPAD                        # 256 merged matmul contraction depth
LANE = 128                                 # lane-dense output slab width


def make_cnn_kernel(tb, seq_len):
    rows = tb * seq_len

    def kernel(ids_ref, wbig_ref, bconv_ref, mask_ref, wfc_ref, bfc_ref, out_ref):
        # ids_ref[b, t] packs the 4 shifted token ids id[b, t+k] one per byte.
        enc = ids_ref[...][:, :, None]                               # (TB, L, 1) i32
        lane = lax.broadcasted_iota(jnp.int32, (1, 1, KPAD), 2)      # (1, 1, 256)

        # Shifted one-hot X[b, t, k*64 + v] = (id[b, t+k] == v), built with pure
        # elementwise ops (no rolls, no lane concatenation).  Each byte is < 64,
        # so a compare can only fire inside its own 64-lane tap group.
        hit = None
        for k in range(S_MAX):
            idk = (enc >> (8 * k)) & 0xFF                            # (TB, L, 1)
            m = idk == (lane - k * VPAD)                             # (TB, L, 256)
            hit = m if hit is None else (hit | m)
        x = hit.astype(jnp.bfloat16).reshape(rows, KPAD)             # layout-preserving

        # Embedding gather + im2col + all filter sizes as ONE MXU matmul:
        # W_big[k*64 + v, :] = (embedding @ conv_tap_k)[v, :]  (bf16 in, f32 acc).
        conv = jnp.dot(x, wbig_ref[...], preferred_element_type=jnp.float32)
        conv = jnp.maximum(conv + bconv_ref[...], 0.0)               # ReLU (rows, NF)

        # Mask invalid tail positions per filter size to 0 AFTER ReLU; safe for
        # the max-over-time pool because ReLU outputs are >= 0 and every filter
        # has at least one valid position (L >= max filter size).
        conv = conv.reshape(tb, seq_len, NF) * mask_ref[...]
        pooled = jnp.max(conv, axis=1)                               # (TB, NF)

        # Classifier, written as a lane-dense (TB, 128) slab.
        logits = jnp.dot(pooled, wfc_ref[...],
                         preferred_element_type=jnp.float32) + bfc_ref[...]
        out_ref[...] = logits.astype(out_ref.dtype)

    return kernel


def init_params(key):
    """Deterministic synthetic parameters matching the PyTorch module shapes."""
    n = len(FILTER_SIZES)
    keys = jax.random.split(key, 2 * n + 3)
    params = {}
    params["embedding"] = (
        jax.random.normal(keys[0], (VOCAB_SIZE, EMBED_DIM), jnp.float32) * 0.1)
    conv_w, conv_b = [], []
    for i, s in enumerate(FILTER_SIZES):
        # PyTorch Conv2d weight is (F, 1, s, E); stored here as (s, E, F).
        conv_w.append(
            jax.random.normal(keys[1 + 2 * i], (s, EMBED_DIM, NUM_FILTERS),
                              jnp.float32) * 0.1)
        conv_b.append(
            jax.random.normal(keys[2 + 2 * i], (NUM_FILTERS,), jnp.float32) * 0.1)
    params["conv_w"] = conv_w
    params["conv_b"] = conv_b
    # PyTorch Linear weight is (C, n*F); stored transposed for x @ W.T.
    params["fc_w_t"] = (
        jax.random.normal(keys[2 * n + 1], (n * NUM_FILTERS, NUM_CLASSES),
                          jnp.float32) * 0.1)
    params["fc_b"] = (
        jax.random.normal(keys[2 * n + 2], (NUM_CLASSES,), jnp.float32) * 0.1)
    return params


def _pick_batch_tile(batch):
    """Largest multiple-of-8 divisor of `batch` up to 128 batch rows per step
    (TB*L = 2048 matmul rows), preferring >= 2 grid steps so both v7x cores get
    work; tiny or awkwardly-sized batches run as a single full tile."""
    cap = 128
    if batch <= 16:
        return batch
    for tb in range(min(cap, batch // 2), 7, -1):
        if batch % tb == 0 and tb % 8 == 0:
            return tb
    return batch


def cnn_classifier_forward(params, input_ids, attention_mask=None):
    # attention_mask is accepted but unused, matching the reference forward.
    del attention_mask
    B, L = input_ids.shape
    assert L >= S_MAX, "sequence must be at least as long as the largest filter"

    TB = _pick_batch_tile(B)
    assert B % TB == 0

    # ---- tiny wrapper-side constant prep (pure XLA glue, all < 100 KiB) ----
    # Shifted token ids packed one per byte: byte k of packed[b, t] = id[b, t+k]
    # (tail positions padded with 0; they only ever feed masked conv positions).
    # TODO(synk): PyTorch nn.Embedding raises on out-of-range ids; we clamp instead.
    ids = jnp.clip(input_ids.astype(jnp.int32), 0, VOCAB_SIZE - 1)
    packed = jnp.zeros((B, L), jnp.int32)
    for k in range(S_MAX):
        shifted = jnp.pad(ids[:, k:], ((0, 0), (0, k)))
        packed = packed | (shifted << (8 * k))

    # Merged conv weight with the embedding folded in:
    # W_big[k*VPAD + v, col(i, f)] = (embedding @ conv_w[i][k])[v, f] for k < size_i.
    tap_blocks = []
    for k in range(S_MAX):
        cols = []
        for i, s in enumerate(FILTER_SIZES):
            if k < s:
                cols.append(params["embedding"] @ params["conv_w"][i][k])   # (V, F)
            else:
                cols.append(jnp.zeros((VOCAB_SIZE, NUM_FILTERS), jnp.float32))
        blk = jnp.concatenate(cols, axis=1)                                 # (V, NF)
        tap_blocks.append(jnp.pad(blk, ((0, VPAD - VOCAB_SIZE), (0, 0))))   # (VPAD, NF)
    w_big = jnp.concatenate(tap_blocks, axis=0).astype(jnp.bfloat16)        # (KPAD, NF)

    b_conv = jnp.concatenate(
        [b.reshape(1, NUM_FILTERS) for b in params["conv_b"]], axis=1)      # (1, NF)

    # Per-(position, filter) validity mask for the max-over-time pool.
    t_idx = jnp.arange(L, dtype=jnp.int32)[:, None]
    mask = jnp.concatenate(
        [jnp.broadcast_to((t_idx <= (L - s)).astype(jnp.float32),
                          (L, NUM_FILTERS)) for s in FILTER_SIZES], axis=1)  # (L, NF)

    # FC padded to a lane-dense 128-wide output slab (classes in lanes 0..3).
    fc_w = jnp.pad(params["fc_w_t"], ((0, 0), (0, LANE - NUM_CLASSES)))      # (NF, 128)
    fc_b = jnp.pad(params["fc_b"].reshape(1, NUM_CLASSES),
                   ((0, 0), (0, LANE - NUM_CLASSES)))                        # (1, 128)

    kernel = make_cnn_kernel(TB, L)

    def resident(shape):
        # Grid-invariant weight/bias/mask blocks (< 100 KiB total); default
        # double-buffering is negligible so pl.Buffered(1) is intentionally
        # not used, keeping the lowering portable.
        return pl.BlockSpec(shape, lambda b: (0, 0))

    out = pl.pallas_call(
        kernel,
        out_shape=jax.ShapeDtypeStruct((B, LANE), jnp.float32),
        grid=(B // TB,),
        in_specs=[
            pl.BlockSpec((TB, L), lambda b: (b, 0)),      # packed ids (lane-dense)
            resident((KPAD, NF)),                         # merged embedding*conv W
            resident((1, NF)),                            # merged conv bias
            resident((L, NF)),                            # validity mask
            resident((NF, LANE)),                         # fc weight^T (lane-padded)
            resident((1, LANE)),                          # fc bias (lane-padded)
        ],
        out_specs=pl.BlockSpec((TB, LANE), lambda b: (b, 0)),
        compiler_params=pltpu.CompilerParams(
            dimension_semantics=("parallel",),
            vmem_limit_bytes=32 * 1024 * 1024),
    )(packed, w_big, b_conv, mask, fc_w, fc_b)

    return out[:, :NUM_CLASSES]


def ref_forward(params, input_ids):
    """Pure-JAX f32 reference mirroring the PyTorch forward semantics."""
    emb = params["embedding"][input_ids]                          # (B, L, E)
    pooled = []
    for i, s in enumerate(FILTER_SIZES):
        w = params["conv_w"][i]                                   # (s, E, F)
        b = params["conv_b"][i]                                   # (F,)
        T = input_ids.shape[1] - s + 1
        conv = sum(
            jnp.einsum("bte,ef->btf", emb[:, k:k + T, :], w[k]) for k in range(s)
        ) + b
        conv = jnp.maximum(conv, 0.0)
        pooled.append(conv.max(axis=1))                           # (B, F)
    cat = jnp.concatenate(pooled, axis=1)                         # (B, n*F)
    return cat @ params["fc_w_t"] + params["fc_b"]


if __name__ == "__main__":
    key = jax.random.PRNGKey(0)
    kp, kx = jax.random.split(key)
    params = init_params(kp)

    # Small shapes matching the module spec; exercises the single-tile path.
    B, L = 2, 16
    input_ids = jax.random.randint(kx, (B, L), 0, VOCAB_SIZE, dtype=jnp.int32)
    attention_mask = jnp.ones((B, L), dtype=jnp.int32)  # unused by forward

    logits = jax.block_until_ready(
        cnn_classifier_forward(params, input_ids, attention_mask))
    expected = ref_forward(params, input_ids)
    assert logits.shape == (B, NUM_CLASSES)
    # Tolerance covers bf16 rounding of the merged (embedding x conv) weights;
    # accumulation is f32 throughout.
    assert jnp.allclose(logits, expected, atol=1e-2, rtol=1e-2), (
        float(jnp.max(jnp.abs(logits - expected))))

    # Larger batch exercises the tiled, multi-step "parallel" grid path (TB=128).
    B2 = 512
    ids2 = jax.random.randint(jax.random.PRNGKey(1), (B2, L), 0, VOCAB_SIZE,
                              dtype=jnp.int32)
    logits2 = jax.block_until_ready(cnn_classifier_forward(params, ids2))
    expected2 = ref_forward(params, ids2)
    assert logits2.shape == (B2, NUM_CLASSES)
    assert jnp.allclose(logits2, expected2, atol=1e-2, rtol=1e-2), (
        float(jnp.max(jnp.abs(logits2 - expected2))))

    print("KERNEL_OK")
</pallas_src>

<mosaic_0001>
module attributes {stable_mosaic.version = 11 : i64} {
  func.func @kernel(%arg0: i32, %arg1: memref<2x16xi32, #tpu.memory_space<vmem>>, %arg2: memref<256x48xbf16, #tpu.memory_space<vmem>>, %arg3: memref<1x48xf32, #tpu.memory_space<vmem>>, %arg4: memref<16x48xf32, #tpu.memory_space<vmem>>, %arg5: memref<48x128xf32, #tpu.memory_space<vmem>>, %arg6: memref<1x128xf32, #tpu.memory_space<vmem>>, %arg7: memref<2x128xf32, #tpu.memory_space<vmem>>) attributes {dimension_semantics = [#tpu.dimension_semantics<parallel>], iteration_bounds = array<i64: 1>, scalar_prefetch = 0 : i64, scratch_operands = 0 : i64, tpu.core_type = #tpu.core_type<tc>, window_params = [{transform_indices = @transform_0, window_bounds = array<i64: 2, 16>}, {pipeline_mode = #tpu.pipeline_mode<synchronous>, transform_indices = @transform_1, window_bounds = array<i64: 256, 48>}, {pipeline_mode = #tpu.pipeline_mode<synchronous>, transform_indices = @transform_2, window_bounds = array<i64: 1, 48>}, {pipeline_mode = #tpu.pipeline_mode<synchronous>, transform_indices = @transform_3, window_bounds = array<i64: 16, 48>}, {pipeline_mode = #tpu.pipeline_mode<synchronous>, transform_indices = @transform_4, window_bounds = array<i64: 48, 128>}, {pipeline_mode = #tpu.pipeline_mode<synchronous>, transform_indices = @transform_5, window_bounds = array<i64: 1, 128>}, {transform_indices = @transform_6, window_bounds = array<i64: 2, 128>}]} {
    %c0 = arith.constant 0 : index
    %c0_0 = arith.constant 0 : index
    %0 = vector.load %arg1[%c0, %c0_0] : memref<2x16xi32, #tpu.memory_space<vmem>>, vector<2x16xi32>
    %1 = vector.shape_cast %0 : vector<2x16xi32> to vector<2x16x1xi32>
    %2 = tpu.iota {dimensions = array<i32: 2>} : vector<1x1x256xi32>
    %c0_i32 = arith.constant 0 : i32
    %3 = vector.broadcast %c0_i32 : i32 to vector<2x16x1xi32>
    %4 = arith.shrsi %1, %3 : vector<2x16x1xi32>
    %c255_i32 = arith.constant 255 : i32
    %5 = vector.broadcast %c255_i32 : i32 to vector<2x16x1xi32>
    %6 = arith.andi %4, %5 : vector<2x16x1xi32>
    %c0_i32_1 = arith.constant 0 : i32
    %7 = vector.broadcast %c0_i32_1 : i32 to vector<1x1x256xi32>
    %8 = arith.subi %2, %7 : vector<1x1x256xi32>
    %9 = vector.broadcast %6 : vector<2x16x1xi32> to vector<2x16x256xi32>
    %10 = vector.broadcast %8 : vector<1x1x256xi32> to vector<2x16x256xi32>
    %11 = arith.cmpi eq, %9, %10 : vector<2x16x256xi32>
    %c8_i32 = arith.constant 8 : i32
    %12 = vector.broadcast %c8_i32 : i32 to vector<2x16x1xi32>
    %13 = arith.shrsi %1, %12 : vector<2x16x1xi32>
    %c255_i32_2 = arith.constant 255 : i32
    %14 = vector.broadcast %c255_i32_2 : i32 to vector<2x16x1xi32>
    %15 = arith.andi %13, %14 : vector<2x16x1xi32>
    %c64_i32 = arith.constant 64 : i32
    %16 = vector.broadcast %c64_i32 : i32 to vector<1x1x256xi32>
    %17 = arith.subi %2, %16 : vector<1x1x256xi32>
    %18 = vector.broadcast %15 : vector<2x16x1xi32> to vector<2x16x256xi32>
    %19 = vector.broadcast %17 : vector<1x1x256xi32> to vector<2x16x256xi32>
    %20 = arith.cmpi eq, %18, %19 : vector<2x16x256xi32>
    %21 = arith.ori %11, %20 : vector<2x16x256xi1>
    %c16_i32 = arith.constant 16 : i32
    %22 = vector.broadcast %c16_i32 : i32 to vector<2x16x1xi32>
    %23 = arith.shrsi %1, %22 : vector<2x16x1xi32>
    %c255_i32_3 = arith.constant 255 : i32
    %24 = vector.broadcast %c255_i32_3 : i32 to vector<2x16x1xi32>
    %25 = arith.andi %23, %24 : vector<2x16x1xi32>
    %c128_i32 = arith.constant 128 : i32
    %26 = vector.broadcast %c128_i32 : i32 to vector<1x1x256xi32>
    %27 = arith.subi %2, %26 : vector<1x1x256xi32>
    %28 = vector.broadcast %25 : vector<2x16x1xi32> to vector<2x16x256xi32>
    %29 = vector.broadcast %27 : vector<1x1x256xi32> to vector<2x16x256xi32>
    %30 = arith.cmpi eq, %28, %29 : vector<2x16x256xi32>
    %31 = arith.ori %21, %30 : vector<2x16x256xi1>
    %c24_i32 = arith.constant 24 : i32
    %32 = vector.broadcast %c24_i32 : i32 to vector<2x16x1xi32>
    %33 = arith.shrsi %1, %32 : vector<2x16x1xi32>
    %c255_i32_4 = arith.constant 255 : i32
    %34 = vector.broadcast %c255_i32_4 : i32 to vector<2x16x1xi32>
    %35 = arith.andi %33, %34 : vector<2x16x1xi32>
    %c192_i32 = arith.constant 192 : i32
    %36 = vector.broadcast %c192_i32 : i32 to vector<1x1x256xi32>
    %37 = arith.subi %2, %36 : vector<1x1x256xi32>
    %38 = vector.broadcast %35 : vector<2x16x1xi32> to vector<2x16x256xi32>
    %39 = vector.broadcast %37 : vector<1x1x256xi32> to vector<2x16x256xi32>
    %40 = arith.cmpi eq, %38, %39 : vector<2x16x256xi32>
    %41 = arith.ori %31, %40 : vector<2x16x256xi1>
    %42 = arith.extui %41 : vector<2x16x256xi1> to vector<2x16x256xi32>
    %43 = arith.sitofp %42 : vector<2x16x256xi32> to vector<2x16x256xf32>
    %44 = arith.truncf %43 : vector<2x16x256xf32> to vector<2x16x256xbf16>
    %45 = vector.shape_cast %44 : vector<2x16x256xbf16> to vector<32x256xbf16>
    %c0_5 = arith.constant 0 : index
    %c0_6 = arith.constant 0 : index
    %46 = vector.load %arg2[%c0_5, %c0_6] : memref<256x48xbf16, #tpu.memory_space<vmem>>, vector<256x48xbf16>
    %cst = arith.constant dense<0.000000e+00> : vector<32x48xf32>
    %47 = tpu.matmul %45, %46, %cst {dimension_numbers = #tpu.dot_dimension_numbers<[1], [0], [0], [1], [0, 0, 1, 1], [], []>} : vector<32x256xbf16>, vector<256x48xbf16>, vector<32x48xf32> -> vector<32x48xf32>
    %c0_7 = arith.constant 0 : index
    %c0_8 = arith.constant 0 : index
    %48 = vector.load %arg3[%c0_7, %c0_8] : memref<1x48xf32, #tpu.memory_space<vmem>>, vector<1x48xf32>
    %49 = vector.broadcast %48 : vector<1x48xf32> to vector<32x48xf32>
    %50 = arith.addf %47, %49 : vector<32x48xf32>
    %cst_9 = arith.constant 0.000000e+00 : f32
    %51 = vector.broadcast %cst_9 : f32 to vector<32x48xf32>
    %52 = arith.maximumf %50, %51 : vector<32x48xf32>
    %53 = vector.shape_cast %52 : vector<32x48xf32> to vector<2x16x48xf32>
    %c0_10 = arith.constant 0 : index
    %c0_11 = arith.constant 0 : index
    %54 = vector.load %arg4[%c0_10, %c0_11] : memref<16x48xf32, #tpu.memory_space<vmem>>, vector<16x48xf32>
    %55 = vector.shape_cast %54 : vector<16x48xf32> to vector<1x16x48xf32>
    %56 = vector.broadcast %55 : vector<1x16x48xf32> to vector<2x16x48xf32>
    %57 = arith.mulf %53, %56 : vector<2x16x48xf32>
    %cst_12 = arith.constant dense<0xFF800000> : vector<2x48xf32>
    %58 = vector.multi_reduction <maximumf>, %57, %cst_12 [1] : vector<2x16x48xf32> to vector<2x48xf32>
    %c0_13 = arith.constant 0 : index
    %c0_14 = arith.constant 0 : index
    %59 = vector.load %arg5[%c0_13, %c0_14] : memref<48x128xf32, #tpu.memory_space<vmem>>, vector<48x128xf32>
    %cst_15 = arith.constant dense<0.000000e+00> : vector<2x128xf32>
    %60 = tpu.matmul %58, %59, %cst_15 {dimension_numbers = #tpu.dot_dimension_numbers<[1], [0], [0], [1], [0, 0, 1, 1], [], []>} : vector<2x48xf32>, vector<48x128xf32>, vector<2x128xf32> -> vector<2x128xf32>
    %c0_16 = arith.constant 0 : index
    %c0_17 = arith.constant 0 : index
    %61 = vector.load %arg6[%c0_16, %c0_17] : memref<1x128xf32, #tpu.memory_space<vmem>>, vector<1x128xf32>
    %62 = vector.broadcast %61 : vector<1x128xf32> to vector<2x128xf32>
    %63 = arith.addf %60, %62 : vector<2x128xf32>
    %c0_18 = arith.constant 0 : index
    %c0_19 = arith.constant 0 : index
    %64 = vector.load %arg7[%c0_18, %c0_19] : memref<2x128xf32, #tpu.memory_space<vmem>>, vector<2x128xf32>
    tpu.vector_store %arg7[%c0_18, %c0_19], %63 {strides = array<i32>} : memref<2x128xf32, #tpu.memory_space<vmem>>, vector<2x128xf32>,
    return
  }
  func.func @transform_0(%arg0: i32) -> (i32, i32) {
    %c0_i32 = arith.constant 0 : i32
    %c0_i32_0 = arith.constant 0 : i32
    return %arg0, %c0_i32 : i32, i32
  }
  func.func @transform_1(%arg0: i32) -> (i32, i32) {
    %c0_i32 = arith.constant 0 : i32
    %c0_i32_0 = arith.constant 0 : i32
    %c0_i32_1 = arith.constant 0 : i32
    return %c0_i32, %c0_i32_0 : i32, i32
  }
  func.func @transform_2(%arg0: i32) -> (i32, i32) {
    %c0_i32 = arith.constant 0 : i32
    %c0_i32_0 = arith.constant 0 : i32
    %c0_i32_1 = arith.constant 0 : i32
    return %c0_i32, %c0_i32_0 : i32, i32
  }
  func.func @transform_3(%arg0: i32) -> (i32, i32) {
    %c0_i32 = arith.constant 0 : i32
    %c0_i32_0 = arith.constant 0 : i32
    %c0_i32_1 = arith.constant 0 : i32
    return %c0_i32, %c0_i32_0 : i32, i32
  }
  func.func @transform_4(%arg0: i32) -> (i32, i32) {
    %c0_i32 = arith.constant 0 : i32
    %c0_i32_0 = arith.constant 0 : i32
    %c0_i32_1 = arith.constant 0 : i32
    return %c0_i32, %c0_i32_0 : i32, i32
  }
  func.func @transform_5(%arg0: i32) -> (i32, i32) {
    %c0_i32 = arith.constant 0 : i32
    %c0_i32_0 = arith.constant 0 : i32
    %c0_i32_1 = arith.constant 0 : i32
    return %c0_i32, %c0_i32_0 : i32, i32
  }
  func.func @transform_6(%arg0: i32) -> (i32, i32) {
    %c0_i32 = arith.constant 0 : i32
    %c0_i32_0 = arith.constant 0 : i32
    return %arg0, %c0_i32 : i32, i32
  }
}

</mosaic_0001>

<llo_original>
// kernel: tpu_custom_call.1
$region0: #{tpu_custom_call.1}
  #allocation0 [shape = 'u32[]', space=smem, size = 0x4, offset = 0x4, fixed_abs, tag = 'smem constant byte address 0x4 - core index']
  #allocation1 [shape = 'u32[144,128]{1,0:T(1,128)}', space=vmem, size = 0x12000, scoped, tag = 'internal scratch']
  %s0 = inlined_call_operand.vmem [shape: s32[2,16], index: 0, kind: input, shape index: {}]
  %s1 = inlined_call_operand.vmem [shape: bf16[256,48], index: 1, kind: input, shape index: {}]
  %s2 = inlined_call_operand.vmem [shape: f32[1,48], index: 2, kind: input, shape index: {}]
  %s3 = inlined_call_operand.vmem [shape: f32[16,48], index: 3, kind: input, shape index: {}]
  %s4 = inlined_call_operand.vmem [shape: f32[48,128], index: 4, kind: input, shape index: {}]
  %s5 = inlined_call_operand.vmem [shape: f32[1,128], index: 5, kind: input, shape index: {}]
  %s6 = inlined_call_operand.hbm [shape: f32[2,128], index: 6, kind: output, shape index: {}]
  %s7 = sld [smem:[#allocation0]]
  $region34: #{tpu_custom_call.1} parent=0
    _
  %s9 = ssub.s32 1, %s7
  %s10 = scalar_select 0, %s9, %s7
  $region1: #{tpu_custom_call.1} parent=0
    #allocation2 [shape = 'u8[1024]{0}', space=vmem, size = 0x400, scoped, tag = 'output window, operand 0, single buffered']
    #allocation3 [shape = 's32[1]{0}', space=sflag, size = 0x4, scoped, tag = 'scoped memory for tpu_custom_call.1']
    %11 = vsyncpa [#allocation3], 0
    // Predicated region
    $region2: #{tpu_custom_call.1} parent=1 // pred_check
      _
    $region3: #{tpu_custom_call.1} parent=1 // pred_check_branch
      %13 = sbr.rel (0) target = $region5
    $region4: #{tpu_custom_call.1} parent=1 // pred_region
      _
    $region5: #{tpu_custom_call.1} parent=1 // pred_fallthru
      _
    // Predicated region
    $region6: #{tpu_custom_call.1} parent=1 // pred_check
      _
    $region7: #{tpu_custom_call.1} parent=1 // pred_check_branch
      %15 = sbr.rel (0) target = $region9
    $region8: #{tpu_custom_call.1} parent=1 // pred_region
      _
    $region9: #{tpu_custom_call.1} parent=1 // pred_fallthru
      _
    // Predicated region
    $region10: #{tpu_custom_call.1} parent=1 // pred_check
      _
    $region11: #{tpu_custom_call.1} parent=1 // pred_check_branch
      %17 = sbr.rel (0) target = $region13
    $region12: #{tpu_custom_call.1} parent=1 // pred_region
      _
    $region13: #{tpu_custom_call.1} parent=1 // pred_fallthru
      _
    // Predicated region
    $region14: #{tpu_custom_call.1} parent=1 // pred_check
      _
    $region15: #{tpu_custom_call.1} parent=1 // pred_check_branch
      %19 = sbr.rel (0) target = $region17
    $region16: #{tpu_custom_call.1} parent=1 // pred_region
      _
    $region17: #{tpu_custom_call.1} parent=1 // pred_fallthru
      _
    // Predicated region
    $region18: #{tpu_custom_call.1} parent=1 // pred_check
      _
    $region19: #{tpu_custom_call.1} parent=1 // pred_check_branch
      %21 = sbr.rel (0) target = $region21
    $region20: #{tpu_custom_call.1} parent=1 // pred_region
      _
    $region21: #{tpu_custom_call.1} parent=1 // pred_fallthru
      _
    // Predicated region
    $region22: #{tpu_custom_call.1} parent=1 // pred_check
      _
    $region23: #{tpu_custom_call.1} parent=1 // pred_check_branch
      %23 = sbr.rel (0) target = $region25
    $region24: #{tpu_custom_call.1} parent=1 // pred_region
      _
    $region25: #{tpu_custom_call.1} parent=1 // pred_fallthru
      _
    %v25 = vld [vmem:[%s0] sm:$0x3]
    %v26 = vlaneseq
    %v27 = vshrl.u32 %v26, 7
    %v28 = vsub.s32 0, %v27
    %v29 = vrot.slane %v25, %v28
    %31 = vbcast.lane.b32.xlu0 %v29, 256
    %v32 = vpop.permute.xlu0 %31
    %s34 = sor.u32 256, 8
    %35 = vbcast.lane.b32.xlu0 %v29, %s34
    %v36 = vpop.permute.xlu0 %35
    %v37 = vlaneseq
    %v38 = vshrl.u32 %v37, 7
    %v39 = vsub.s32 1, %v38
    %v40 = vrot.slane %v25, %v39
    %42 = vbcast.lane.b32.xlu0 %v40, 256
    %v43 = vpop.permute.xlu0 %42
    %s45 = sor.u32 256, 8
    %46 = vbcast.lane.b32.xlu0 %v40, %s45
    %v47 = vpop.permute.xlu0 %46
    %v48 = vlaneseq
    %v49 = vand.u32 %v48, 127
    %v50 = vadd.s32 %v49, 128
    %v51 = vand.u32 %v32, 255
    %v52 = vand.u32 %v36, 255
    %v53 = vand.u32 %v43, 255
    %v54 = vand.u32 %v47, 255
    %vm55 = vcmp.eq.s32.totalorder %v51, %v49
    %vm56 = vcmp.eq.s32.totalorder %v51, %v50
    %vm57 = vcmp.eq.s32.totalorder %v52, %v49
    %vm58 = vcmp.eq.s32.totalorder %v52, %v50
    %vm59 = vcmp.eq.s32.totalorder %v53, %v49
    %vm60 = vcmp.eq.s32.totalorder %v53, %v50
    %vm61 = vcmp.eq.s32.totalorder %v54, %v49
    %vm62 = vcmp.eq.s32.totalorder %v54, %v50
    %v63 = vshra.s32 %v32, 8
    %v64 = vshra.s32 %v36, 8
    %v65 = vshra.s32 %v43, 8
    %v66 = vshra.s32 %v47, 8
    %v67 = vand.u32 %v63, 255
    %v68 = vand.u32 %v64, 255
    %v69 = vand.u32 %v65, 255
    %v70 = vand.u32 %v66, 255
    %v71 = vsub.s32 %v49, 64
    %v72 = vsub.s32 %v50, 64
    %vm73 = vcmp.eq.s32.totalorder %v67, %v71
    %vm74 = vcmp.eq.s32.totalorder %v67, %v72
    %vm75 = vcmp.eq.s32.totalorder %v68, %v71
    %vm76 = vcmp.eq.s32.totalorder %v68, %v72
    %vm77 = vcmp.eq.s32.totalorder %v69, %v71
    %vm78 = vcmp.eq.s32.totalorder %v69, %v72
    %vm79 = vcmp.eq.s32.totalorder %v70, %v71
    %vm80 = vcmp.eq.s32.totalorder %v70, %v72
    %vm81 = vmor %vm55, %vm73
    %vm82 = vmor %vm56, %vm74
    %vm83 = vmor %vm57, %vm75
    %vm84 = vmor %vm58, %vm76
    %vm85 = vmor %vm59, %vm77
    %vm86 = vmor %vm60, %vm78
    %vm87 = vmor %vm61, %vm79
    %vm88 = vmor %vm62, %vm80
    %v89 = vshra.s32 %v32, 16
    %v90 = vshra.s32 %v36, 16
    %v91 = vshra.s32 %v43, 16
    %v92 = vshra.s32 %v47, 16
    %v93 = vand.u32 %v89, 255
    %v94 = vand.u32 %v90, 255
    %v95 = vand.u32 %v91, 255
    %v96 = vand.u32 %v92, 255
    %v97 = vsub.s32 %v49, 128
    %vm98 = vcmp.eq.s32.totalorder %v93, %v97
    %vm99 = vcmp.eq.s32.totalorder %v93, %v49
    %vm100 = vcmp.eq.s32.totalorder %v94, %v97
    %vm101 = vcmp.eq.s32.totalorder %v94, %v49
    %vm102 = vcmp.eq.s32.totalorder %v95, %v97
    %vm103 = vcmp.eq.s32.totalorder %v95, %v49
    %vm104 = vcmp.eq.s32.totalorder %v96, %v97
    %vm105 = vcmp.eq.s32.totalorder %v96, %v49
    %vm106 = vmor %vm81, %vm98
    %vm107 = vmor %vm82, %vm99
    %vm108 = vmor %vm83, %vm100
    %vm109 = vmor %vm84, %vm101
    %vm110 = vmor %vm85, %vm102
    %vm111 = vmor %vm86, %vm103
    %vm112 = vmor %vm87, %vm104
    %vm113 = vmor %vm88, %vm105
    %v114 = vshra.s32 %v32, 24
    %v115 = vshra.s32 %v36, 24
    %v116 = vshra.s32 %v43, 24
    %v117 = vshra.s32 %v47, 24
    %v118 = vand.u32 %v114, 255
    %v119 = vand.u32 %v115, 255
    %v120 = vand.u32 %v116, 255
    %v121 = vand.u32 %v117, 255
    %v122 = vsub.s32 %v49, 192
    %v123 = vsub.s32 %v50, 192
    %vm124 = vcmp.eq.s32.totalorder %v118, %v122
    %vm125 = vcmp.eq.s32.totalorder %v118, %v123
    %vm126 = vcmp.eq.s32.totalorder %v119, %v122
    %vm127 = vcmp.eq.s32.totalorder %v119, %v123
    %vm128 = vcmp.eq.s32.totalorder %v120, %v122
    %vm129 = vcmp.eq.s32.totalorder %v120, %v123
    %vm130 = vcmp.eq.s32.totalorder %v121, %v122
    %vm131 = vcmp.eq.s32.totalorder %v121, %v123
    %vm132 = vmor %vm106, %vm124
    %vm133 = vmor %vm107, %vm125
    %vm134 = vmor %vm108, %vm126
    %vm135 = vmor %vm109, %vm127
    %vm136 = vmor %vm110, %vm128
    %vm137 = vmor %vm111, %vm129
    %vm138 = vmor %vm112, %vm130
    %vm139 = vmor %vm113, %vm131
    %v140 = vsel %vm132, 1, 0
    %v141 = vsel %vm133, 1, 0
    %v142 = vsel %vm134, 1, 0
    %v143 = vsel %vm135, 1, 0
    %v144 = vsel %vm136, 1, 0
    %v145 = vsel %vm137, 1, 0
    %v146 = vsel %vm138, 1, 0
    %v147 = vsel %vm139, 1, 0
    %v148 = vcvt.s32.f32 %v140
    %v149 = vcvt.s32.f32 %v141
    %v150 = vcvt.s32.f32 %v142
    %v151 = vcvt.s32.f32 %v143
    %v152 = vcvt.s32.f32 %v144
    %v153 = vcvt.s32.f32 %v145
    %v154 = vcvt.s32.f32 %v146
    %v155 = vcvt.s32.f32 %v147
    %v156 = vpack.c.bf16 %v150, %v148
    %v157 = vpack.c.bf16 %v151, %v149
    %v158 = vpack.c.bf16 %v154, %v152
    %v159 = vpack.c.bf16 %v155, %v153
    %v160 = vld [vmem:[%s1] sm:$0xf]
    %v161 = vld [vmem:[%s1 + $0x4] sm:$0xf]
    %v162 = vld [vmem:[%s1 + $0x8] sm:$0xf]
    %v163 = vld [vmem:[%s1 + $0xc] sm:$0xf]
    %v164 = vld [vmem:[%s1 + $0x10] sm:$0xf]
    %v165 = vld [vmem:[%s1 + $0x14] sm:$0xf]
    %v166 = vld [vmem:[%s1 + $0x18] sm:$0xf]
    %v167 = vld [vmem:[%s1 + $0x1c] sm:$0xf]
    %v168 = vld [vmem:[%s1 + $0x20] sm:$0xf]
    %v169 = vld [vmem:[%s1 + $0x24] sm:$0xf]
    %v170 = vld [vmem:[%s1 + $0x28] sm:$0xf]
    %v171 = vld [vmem:[%s1 + $0x2c] sm:$0xf]
    %v172 = vld [vmem:[%s1 + $0x30] sm:$0xf]
    %v173 = vld [vmem:[%s1 + $0x34] sm:$0xf]
    %v174 = vld [vmem:[%s1 + $0x38] sm:$0xf]
    %v175 = vld [vmem:[%s1 + $0x3c] sm:$0xf]
    %v176 = vld [vmem:[%s1 + $0x40] sm:$0xf]
    %v177 = vld [vmem:[%s1 + $0x44] sm:$0xf]
    %v178 = vld [vmem:[%s1 + $0x48] sm:$0xf]
    %v179 = vld [vmem:[%s1 + $0x4c] sm:$0xf]
    %v180 = vld [vmem:[%s1 + $0x50] sm:$0xf]
    %v181 = vld [vmem:[%s1 + $0x54] sm:$0xf]
    %v182 = vld [vmem:[%s1 + $0x58] sm:$0xf]
    %v183 = vld [vmem:[%s1 + $0x5c] sm:$0xf]
    %v184 = vld [vmem:[%s1 + $0x60] sm:$0xf]
    %v185 = vld [vmem:[%s1 + $0x64] sm:$0xf]
    %v186 = vld [vmem:[%s1 + $0x68] sm:$0xf]
    %v187 = vld [vmem:[%s1 + $0x6c] sm:$0xf]
    %v188 = vld [vmem:[%s1 + $0x70] sm:$0xf]
    %v189 = vld [vmem:[%s1 + $0x74] sm:$0xf]
    %v190 = vld [vmem:[%s1 + $0x78] sm:$0xf]
    %v191 = vld [vmem:[%s1 + $0x7c] sm:$0xf]
    %v192 = vld [vmem:[%s2] sm:$0x1]
    %v194 = vlaneseq
    %v195 = vshrl.u32 %v194, 7
    %v196 = vsub.s32 0, %v195
    %v197 = vrot.slane %v192, %v196
    %v231 = vunpack.c.l.b16 %v160
    %v232 = vunpack.c.l.b16 %v161
    %v233 = vunpack.c.l.b16 %v162
    %v234 = vunpack.c.l.b16 %v163
    %v235 = vunpack.c.l.b16 %v164
    %v236 = vunpack.c.l.b16 %v165
    %v237 = vunpack.c.l.b16 %v166
    %v238 = vunpack.c.l.b16 %v167
    %v239 = vunpack.c.l.b16 %v168
    %v240 = vunpack.c.l.b16 %v169
    %v241 = vunpack.c.l.b16 %v170
    %v242 = vunpack.c.l.b16 %v171
    %v243 = vunpack.c.l.b16 %v172
    %v244 = vunpack.c.l.b16 %v173
    %v245 = vunpack.c.l.b16 %v174
    %v246 = vunpack.c.l.b16 %v175
    %v247 = vunpack.c.l.b16 %v176
    %v248 = vunpack.c.l.b16 %v177
    %v249 = vunpack.c.l.b16 %v178
    %v250 = vunpack.c.l.b16 %v179
    %v251 = vunpack.c.l.b16 %v180
    %v252 = vunpack.c.l.b16 %v181
    %v253 = vunpack.c.l.b16 %v182
    %v254 = vunpack.c.l.b16 %v183
    %v255 = vunpack.c.l.b16 %v184
    %v256 = vunpack.c.l.b16 %v185
    %v257 = vunpack.c.l.b16 %v186
    %v258 = vunpack.c.l.b16 %v187
    %v259 = vunpack.c.l.b16 %v188
    %v260 = vunpack.c.l.b16 %v189
    %v261 = vunpack.c.l.b16 %v190
    %v262 = vunpack.c.l.b16 %v191
    %v263 = vpack.c.b16 %v232, %v231
    %v264 = vpack.c.b16 %v234, %v233
    %v265 = vpack.c.b16 %v236, %v235
    %v266 = vpack.c.b16 %v238, %v237
    %v267 = vpack.c.b16 %v240, %v239
    %v268 = vpack.c.b16 %v242, %v241
    %v269 = vpack.c.b16 %v244, %v243
    %v270 = vpack.c.b16 %v246, %v245
    %v271 = vpack.c.b16 %v248, %v247
    %v272 = vpack.c.b16 %v250, %v249
    %v273 = vpack.c.b16 %v252, %v251
    %v274 = vpack.c.b16 %v254, %v253
    %v275 = vpack.c.b16 %v256, %v255
    %v276 = vpack.c.b16 %v258, %v257
    %v277 = vpack.c.b16 %v260, %v259
    %v278 = vpack.c.b16 %v262, %v261
    %295 = vmatprep.subr.bf16.mxu0 0
    %296 = vmatpush1.bf16.msra.mxu0 %v263
    %297 = vmatprep.subr.bf16.mxu0 0
    %298 = vmatpush1.bf16.msra.mxu0 %v264
    %299 = vmatprep.subr.bf16.mxu0 0
    %300 = vmatpush1.bf16.msra.mxu0 %v265
    %301 = vmatprep.subr.bf16.mxu0 0
    %302 = vmatpush1.bf16.msra.mxu0 %v266
    %303 = vmatprep.subr.bf16.mxu0 0
    %304 = vmatpush1.bf16.msra.mxu0 %v267
    %305 = vmatprep.subr.bf16.mxu0 0
    %306 = vmatpush1.bf16.msra.mxu0 %v268
    %307 = vmatprep.subr.bf16.mxu0 0
    %308 = vmatpush1.bf16.msra.mxu0 %v269
    %309 = vmatprep.subr.bf16.mxu0 0
    %310 = vmatpush1.bf16.msra.mxu0 %v270
    %311 = vmatprep.subr.bf16.mxu0 0
    %312 = vmatpush1.bf16.msra.mxu0 %v271
    %313 = vmatprep.subr.bf16.mxu0 0
    %314 = vmatpush1.bf16.msra.mxu0 %v272
    %315 = vmatprep.subr.bf16.mxu0 0
    %316 = vmatpush1.bf16.msra.mxu0 %v273
    %317 = vmatprep.subr.bf16.mxu0 0
    %318 = vmatpush1.bf16.msra.mxu0 %v274
    %319 = vmatprep.subr.bf16.mxu0 0
    %320 = vmatpush1.bf16.msra.mxu0 %v275
    %321 = vmatprep.subr.bf16.mxu0 0
    %322 = vmatpush1.bf16.msra.mxu0 %v276
    %323 = vmatprep.subr.bf16.mxu0 0
    %324 = vmatpush1.bf16.msra.mxu0 %v277
    %325 = vmatprep.subr.bf16.mxu0 0
    %326 = vmatpush1.bf16.msra.mxu0 %v278
    %327 = vmatprep.mubr.bf16.mxu0 %v157
    %328 = vmatmul.mubr.bf16.gmra.mrb[0].mxu0 %v156
    %v329 = vpop.f32.mrb[0].mxu0
    %v330 = vadd.f32 %v197, %v329
    %v331 = vpop.f32.mrb[0].mxu0
    %v332 = vpop.f32.mrb[0].mxu0
    %v333 = vadd.f32 %v197, %v332
    %v334 = vpop.f32.mrb[0].mxu0
    %335 = vmatprep.mubr.bf16.mxu0 %v159
    %336 = vmatmul.mubr.bf16.gmra.mrb[0].mxu0 %v158
    %v337 = vpop.f32.mrb[0].mxu0
    %v338 = vadd.f32 %v197, %v337
    %v339 = vpop.f32.mrb[0].mxu0
    %v340 = vpop.f32.mrb[0].mxu0
    %v341 = vadd.f32 %v197, %v340
    %v342 = vpop.f32.mrb[0].mxu0
    %343 = vdwg.mxu0
    %v344 = vmax.f32 %v330, 0.0
    %v345 = vmax.f32 %v333, 0.0
    %v346 = vmax.f32 %v338, 0.0
    %v347 = vmax.f32 %v341, 0.0
    %v348 = vld [vmem:[%s3] sm:$0xff]
    %v349 = vld [vmem:[%s3 + $0x8] sm:$0xff]
    %v350 = vmul.f32 %v344, %v348
    %v351 = vmul.f32 %v345, %v349
    %v352 = vmul.f32 %v346, %v348
    %v353 = vmul.f32 %v347, %v349
    %vm354 = vcmask 392192
    %v355 = vsel %vm354, %v350, -inf
    %v356 = vsel %vm354, %v351, -inf
    %v357 = vmax.f32 %v355, %v356
    %v358 = vrot.slane %v357, 4
    %v359 = vmax.f32 %v357, %v358
    %v360 = vrot.slane %v359, 2
    %v361 = vmax.f32 %v359, %v360
    %v362 = vrot.slane %v361, 1
    %v363 = vmax.f32 %v361, %v362
    %v364 = vsel %vm354, %v352, -inf
    %v365 = vsel %vm354, %v353, -inf
    %v366 = vmax.f32 %v364, %v365
    %v367 = vrot.slane %v366, 4
    %v368 = vmax.f32 %v366, %v367
    %v369 = vrot.slane %v368, 2
    %v370 = vmax.f32 %v368, %v369
    %v371 = vrot.slane %v370, 1
    %v372 = vmax.f32 %v370, %v371
    %v373 = vld [vmem:[%s4] sm:$0xff]
    %v374 = vld [vmem:[%s4 + $0x8] sm:$0xff]
    %v375 = vld [vmem:[%s4 + $0x10] sm:$0xff]
    %v376 = vld [vmem:[%s4 + $0x18] sm:$0xff]
    %v377 = vld [vmem:[%s4 + $0x20] sm:$0xff]
    %v378 = vld [vmem:[%s4 + $0x28] sm:$0xff]
    %v379 = vld [vmem:[%s5] sm:$0x1]
    %v381 = vlaneseq
    %v382 = vshrl.u32 %v381, 7
    %v383 = vsub.s32 0, %v382
    %v384 = vrot.slane %v379, %v383
    %vm388 = vcmask 1041409
    %v389 = vsel %vm388, %v372, %v363
    %v390 = vsel %vm354, %v389, 0
    %392 = vmatprep.subr.mxu0 0.0
    %393 = vmatpush1.msra.mxu0 %v373
    %394 = vmatprep.subr.mxu0 0.0
    %395 = vmatpush1.msra.mxu0 %v374
    %396 = vmatprep.subr.mxu0 0.0
    %397 = vmatpush1.msra.mxu0 %v375
    %398 = vmatprep.subr.mxu0 0.0
    %399 = vmatpush1.msra.mxu0 %v376
    %400 = vmatprep.subr.mxu0 0.0
    %401 = vmatpush1.msra.mxu0 %v377
    %402 = vmatprep.subr.mxu0 0.0
    %403 = vmatpush1.msra.mxu0 %v378
    %404 = vmatprep.subr.mxu0 0.0
    %405 = vmatpush1.msra.mxu0 0.0
    %406 = vmatprep.subr.mxu0 0.0
    %407 = vmatpush1.msra.mxu0 0.0
    %408 = vmatprep.subr.mxu0 0.0
    %409 = vmatpush1.msra.mxu0 0.0
    %410 = vmatprep.subr.mxu0 0.0
    %411 = vmatpush1.msra.mxu0 0.0
    %412 = vmatprep.subr.mxu0 0.0
    %413 = vmatpush1.msra.mxu0 0.0
    %414 = vmatprep.subr.mxu0 0.0
    %415 = vmatpush1.msra.mxu0 0.0
    %416 = vmatprep.subr.mxu0 0.0
    %417 = vmatpush1.msra.mxu0 0.0
    %418 = vmatprep.subr.mxu0 0.0
    %419 = vmatpush1.msra.mxu0 0.0
    %420 = vmatprep.subr.mxu0 0.0
    %421 = vmatpush1.msra.mxu0 0.0
    %422 = vmatprep.subr.mxu0 0.0
    %423 = vmatpush1.msra.mxu0 0.0
    %424 = vmatprep.subr.mxu0 0.0
    %425 = vmatpush1.msra.mxu0 0.0
    %426 = vmatprep.subr.mxu0 0.0
    %427 = vmatpush1.msra.mxu0 0.0
    %428 = vmatprep.subr.mxu0 0.0
    %429 = vmatpush1.msra.mxu0 0.0
    %430 = vmatprep.subr.mxu0 0.0
    %431 = vmatpush1.msra.mxu0 0.0
    %432 = vmatprep.subr.mxu0 0.0
    %433 = vmatpush1.msra.mxu0 0.0
    %434 = vmatprep.subr.mxu0 0.0
    %435 = vmatpush1.msra.mxu0 0.0
    %436 = vmatprep.subr.mxu0 0.0
    %437 = vmatpush1.msra.mxu0 0.0
    %438 = vmatprep.subr.mxu0 0.0
    %439 = vmatpush1.msra.mxu0 0.0
    %440 = vmatprep.subr.mxu0 0.0
    %441 = vmatpush1.msra.mxu0 0.0
    %442 = vmatprep.subr.mxu0 0.0
    %443 = vmatpush1.msra.mxu0 0.0
    %444 = vmatprep.subr.mxu0 0.0
    %445 = vmatpush1.msra.mxu0 0.0
    %446 = vmatprep.subr.mxu0 0.0
    %447 = vmatpush1.msra.mxu0 0.0
    %448 = vmatprep.subr.mxu0 0.0
    %449 = vmatpush1.msra.mxu0 0.0
    %450 = vmatprep.subr.mxu0 0.0
    %451 = vmatpush1.msra.mxu0 0.0
    %452 = vmatprep.subr.mxu0 0.0
    %453 = vmatpush1.msra.mxu0 0.0
    %454 = vmatprep.subr.mxu0 0.0
    %455 = vmatpush1.msra.mxu0 0.0
    %456 = vmatprep.mubr.f32.mxu0 0.0
    %457 = vmatmul.mubr.f32.gmra.mrb[0].mxu0 %v390
    %v458 = vpop.f32.mrb[0].mxu0
    %v459 = vadd.f32 %v384, %v458
    %v460 = vpop.f32.mrb[0].mxu0
    %461 = vdwg.mxu0
    %462 = vst [vmem:[#allocation2] sm:$0x3] %v459
    // Predicated region
    $region26: #{tpu_custom_call.1} parent=1 // pred_check
      _
    $region27: #{tpu_custom_call.1} parent=1 // pred_check_branch
      %464 = sbr.rel (0) target = $region29
    $region28: #{tpu_custom_call.1} parent=1 // pred_region
      %s466 = ssub.s32 32, 32
      %467 = vsyncadd [#allocation3], %s466
      %s469 = sshll.u32 [#allocation2], 4
      %s470 = int_to_ptr.vmem [resolvable:$true] %s469
      %472 = dma.vmem_to_hbm [thread:$0]  %s470, 32, %s6, [#allocation3]
    $region29: #{tpu_custom_call.1} parent=1 // pred_fallthru
      _
    // Predicated region
    $region30: #{tpu_custom_call.1} parent=1 // pred_check
      _
    $region31: #{tpu_custom_call.1} parent=1 // pred_check_branch
      %474 = sbr.rel (0) target = $region33
    $region32: #{tpu_custom_call.1} parent=1 // pred_region
      %475 = dma.done [#allocation3], 32
    $region33: #{tpu_custom_call.1} parent=1 // pred_fallthru
      _
    %476 = vsyncpa [#allocation3], 1

</llo_original>
